<compile_context>
chip_gen: v5e
topology: v5e:2x2
jax: 0.10.0
libtpu: 0.0.40
codegen_flags: <defaults>
</compile_context>

<pallas_src>
import functools

import jax
import jax.numpy as jnp
from jax import lax
from jax.experimental import pallas as pl
from jax.experimental.pallas import tpu as pltpu


def _masked_conv1d_kernel(*refs, K, stride, pad, TT, H_l, H_r, has_halo):
    """One (batch, time-tile) grid step.

    refs (has_halo=True):
      x_ref    : (s, Cin, TT)              bf16 phase-deinterleaved center tile
      halo_ref : (s, Cin, H_l + H_r)       bf16 halo columns for this tile
      w_ref    : (K, Cout, Cin)            bf16 conv weight, tap-major (resident)
      b_ref    : (Cout, 1)                 f32 bias (resident)
      m_ref    : (1, TT)                   f32 down-sampled mask tile
      o_ref    : (Cout, TT)                output tile (x.dtype)
      xbuf_ref : (s, Cin, H_l + TT + H_r)  bf16 VMEM scratch window
    """
    if has_halo:
        x_ref, halo_ref, w_ref, b_ref, m_ref, o_ref, xbuf_ref = refs
        # Assemble [left halo | center tile | right halo] once per tile.  Cheap
        # on-chip VMEM traffic; every subsequent per-tap load is a static,
        # unit-stride lane slice of this window.
        xbuf_ref[:, :, H_l:H_l + TT] = x_ref[...]
        if H_l > 0:
            xbuf_ref[:, :, 0:H_l] = halo_ref[:, :, 0:H_l]
        if H_r > 0:
            xbuf_ref[:, :, H_l + TT:H_l + TT + H_r] = halo_ref[:, :, H_l:H_l + H_r]
    else:  # pad == 0 (K == 1): the center tile already is the full window
        x_ref, w_ref, b_ref, m_ref, o_ref = refs
        xbuf_ref = x_ref

    cout, tt = o_ref.shape
    # Initialize the accumulator from the broadcast bias (saves a separate VPU pass).
    acc = jnp.broadcast_to(b_ref[...], (cout, tt)).astype(jnp.float32)

    # K is small & static -> unrolled.  K back-to-back (Cout,Cin)@(Cin,TT) MXU matmuls
    # accumulating into one f32 tile (no intermediate stores).
    for t in range(K):
        phase = (t - pad) % stride           # static
        off = (t - pad) // stride + H_l      # static, in [0, H_l + H_r]
        x_slab = xbuf_ref[phase, :, off:off + TT]            # (Cin, TT), unit stride
        acc = acc + jnp.dot(w_ref[t], x_slab, preferred_element_type=jnp.float32)

    # Epilogue in f32 (v5e has no bf16 VPU); mask multiply fused into the store.
    o_ref[...] = (acc * m_ref[...]).astype(o_ref.dtype)


def _pick_time_tile(T_out, Cin, Cout, stride, *, x_bytes=2, out_bytes=4):
    """Largest lane-aligned (multiple-of-128) time tile whose double-buffered working
    set stays well under the 32 MiB scoped-VMEM budget (safe for v7x's 64 MiB part).
    Re-sweep per chip generation for peak; callers may override via time_tile=."""
    budget = 12 * 1024 * 1024
    divisors = [tt for tt in (2048, 1024, 512, 256, 128) if T_out % tt == 0]
    if not divisors:
        return T_out  # small / ragged T: single tile over time (block == full dim)
    for tt in divisors:  # largest first
        per_step = (2 * tt * (stride * Cin * x_bytes + Cout * out_bytes + 4)
                    + 4 * Cout * tt)  # 2x-buffered x/out/mask tiles + f32 accumulator
        if per_step <= budget:
            return tt
    return divisors[-1]


def masked_conv1d(x, mask, weight, bias, *, stride=1, time_tile=None,
                  compute_dtype=jnp.bfloat16):
    """x: (B, Cin, T) float, mask: (B, 1, T) bool, weight: (Cout, Cin, K), bias: (Cout,).
    Returns (out_conv (B, Cout, T//stride) in x.dtype, out_mask (B, 1, T//stride) bool)."""
    B, Cin, T = x.shape
    Cout, Cin_w, K = weight.shape
    assert Cin_w == Cin
    assert K % 2 == 1
    pad = K // 2                      # 'same' padding, as asserted by the module
    s = int(stride)
    assert T % s == 0
    T_out = T // s

    # ---- wrapper-side glue (one XLA pass each; no full-array jnp.pad) -------------
    xc = x.astype(compute_dtype)      # bf16 MXU operands (accumulation stays f32)
    if s > 1:
        # De-interleave time into `s` phases so every in-kernel tap load is
        # unit-stride on the lane axis:  x_ph[b, p, c, m] = x[b, c, m*s + p]
        x_ph = jnp.transpose(xc.reshape(B, Cin, T_out, s), (0, 3, 1, 2))
    else:
        x_ph = xc[:, None, :, :]                                    # (B, 1, Cin, T)
    w_t = jnp.transpose(weight, (2, 0, 1)).astype(compute_dtype)    # (K, Cout, Cin)
    b2 = bias.reshape(Cout, 1).astype(jnp.float32)
    mask_ds = mask[:, :, ::s] if s > 1 else mask  # nearest interp == every s-th step
    mask_f = mask_ds.astype(jnp.float32)

    # ---- time tiling ---------------------------------------------------------------
    TT = int(time_tile) if time_tile is not None else _pick_time_tile(T_out, Cin, Cout, s)
    assert T_out % TT == 0 and (TT == T_out or TT % 128 == 0)
    nT = T_out // TT

    # Per-tap (phase, shift) decomposition:
    #   x[o*s + t - pad] == x_ph[(t - pad) % s, o + (t - pad)//s]
    # The shifts define the halo columns each tile needs from its neighbors.
    shifts = [(t - pad) // s for t in range(K)]
    H_l, H_r = -min(shifts), max(shifts)          # H_l = ceil(pad/s), H_r = pad // s
    H = H_l + H_r
    has_halo = H > 0

    inputs = [x_ph]
    in_specs = [pl.BlockSpec((None, s, Cin, TT), lambda b, j: (b, 0, 0, j))]

    if has_halo:
        # Tiny per-tile halo array (<= K-1 columns per tile) gathered once in XLA;
        # out-of-range columns at the sequence edges are zeroed (== zero padding).
        starts = jnp.arange(nT) * TT
        pieces = []
        if H_l > 0:
            pieces.append(starts[:, None] - H_l + jnp.arange(H_l)[None, :])
        if H_r > 0:
            pieces.append(starts[:, None] + TT + jnp.arange(H_r)[None, :])
        cols = jnp.concatenate(pieces, axis=1)                         # (nT, H)
        valid = (cols >= 0) & (cols < T_out)
        halo = jnp.take(x_ph, jnp.clip(cols, 0, T_out - 1).reshape(-1), axis=-1)
        halo = halo.reshape(B, s, Cin, nT, H)
        halo = jnp.where(valid.reshape(1, 1, 1, nT, H), halo, 0).astype(compute_dtype)
        halo = jnp.transpose(halo, (0, 3, 1, 2, 4))                    # (B, nT, s, Cin, H)
        inputs.append(halo)
        in_specs.append(
            pl.BlockSpec((None, None, s, Cin, H), lambda b, j: (b, j, 0, 0, 0)))

    inputs += [w_t, b2, mask_f]
    in_specs += [
        pl.BlockSpec((K, Cout, Cin), lambda b, j: (0, 0, 0)),   # weight: VMEM-resident
        pl.BlockSpec((Cout, 1), lambda b, j: (0, 0)),           # bias:   VMEM-resident
        pl.BlockSpec((None, 1, TT), lambda b, j: (b, 0, j)),    # mask tile
    ]
    scratch = ([pltpu.VMEM((s, Cin, H_l + TT + H_r), compute_dtype)]
               if has_halo else [])

    kernel = functools.partial(_masked_conv1d_kernel, K=K, stride=s, pad=pad,
                               TT=TT, H_l=H_l, H_r=H_r, has_halo=has_halo)

    flops = 2 * B * Cout * Cin * K * T_out
    bytes_accessed = int(x_ph.size * x_ph.dtype.itemsize
                         + w_t.size * w_t.dtype.itemsize
                         + mask_f.size * 4
                         + B * Cout * T_out * x.dtype.itemsize)

    out_conv = pl.pallas_call(
        kernel,
        out_shape=jax.ShapeDtypeStruct((B, Cout, T_out), x.dtype),
        grid=(B, nT),
        in_specs=in_specs,
        out_specs=pl.BlockSpec((None, Cout, TT), lambda b, j: (b, 0, j)),
        scratch_shapes=scratch,
        compiler_params=pltpu.CompilerParams(
            # Each (b, j) writes a disjoint output tile -> both axes can be
            # sharded across v7x's two TensorCores.
            dimension_semantics=("parallel", "parallel"),
            vmem_limit_bytes=32 * 1024 * 1024),
        cost_estimate=pl.CostEstimate(flops=flops, transcendentals=0,
                                      bytes_accessed=bytes_accessed),
    )(*inputs)

    # Note: small production channel counts (<128) would benefit from folding the K
    # taps into one (Cout, K*Cin) @ (K*Cin, TT) matmul; TriDet uses Cin=Cout=512, so
    # the per-tap matmuls already fill the MXU.
    out_mask = mask_ds.astype(bool)
    return out_conv, out_mask


def _reference(x, mask, weight, bias, *, stride=1, compute_dtype=jnp.bfloat16):
    """Plain-JAX reference (nn.Conv1d + masking) on bf16-rounded operands."""
    pad = weight.shape[-1] // 2
    xr = x.astype(compute_dtype).astype(jnp.float32)
    wr = weight.astype(compute_dtype).astype(jnp.float32)
    out = lax.conv_general_dilated(
        xr, wr, window_strides=(stride,), padding=[(pad, pad)],
        dimension_numbers=("NCH", "OIH", "NCH"),
        precision=lax.Precision.HIGHEST)
    out = out + bias.astype(jnp.float32)[None, :, None]
    mask_ds = mask[:, :, ::stride] if stride > 1 else mask
    out = (out * mask_ds.astype(out.dtype)).astype(x.dtype)
    return out, mask_ds.astype(bool)


if __name__ == "__main__":
    root = jax.random.PRNGKey(0)

    def run_case(key, *, B, Cin, Cout, T, K, stride, time_tile=None, zero_bias=False):
        k_x, k_w, k_b, k_len = jax.random.split(key, 4)
        x = jax.random.normal(k_x, (B, Cin, T), dtype=jnp.float32)
        weight = jax.random.normal(k_w, (Cout, Cin, K), dtype=jnp.float32) * 0.1
        bias = (jnp.zeros((Cout,), jnp.float32) if zero_bias else
                jax.random.normal(k_b, (Cout,), dtype=jnp.float32) * 0.1)
        lengths = jax.random.randint(k_len, (B,), T // 2, T + 1)
        mask = jnp.arange(T)[None, None, :] < lengths[:, None, None]   # (B, 1, T) bool

        out_conv, out_mask = masked_conv1d(x, mask, weight, bias,
                                           stride=stride, time_tile=time_tile)
        out_conv = jax.block_until_ready(out_conv)
        out_mask = jax.block_until_ready(out_mask)

        ref_conv, ref_mask = _reference(x, mask, weight, bias, stride=stride)
        T_out = T // stride
        assert out_conv.shape == (B, Cout, T_out) and out_conv.dtype == x.dtype
        assert out_mask.shape == (B, 1, T_out) and out_mask.dtype == jnp.bool_
        err = jnp.max(jnp.abs(out_conv - ref_conv))
        assert jnp.allclose(out_conv, ref_conv, atol=1e-2, rtol=1e-2), f"max err {err}"
        assert jnp.array_equal(out_mask, ref_mask)

    keys = jax.random.split(root, 4)
    # 1) small config mirroring the module defaults (K=3, stride=1, zero-init bias)
    run_case(keys[0], B=2, Cin=4, Cout=6, T=16, K=3, stride=1, zero_bias=True)
    # 2) multi-tile time axis (4 tiles of 128): exercises the inter-tile halo path
    run_case(keys[1], B=2, Cin=8, Cout=16, T=512, K=3, stride=1, time_tile=128)
    # 3) strided conv: phase de-interleave path (stride=2, K=5, 2 time tiles)
    run_case(keys[2], B=2, Cin=8, Cout=16, T=512, K=5, stride=2, time_tile=128)
    # 4) pointwise conv (K=1): no-halo path
    run_case(keys[3], B=2, Cin=4, Cout=4, T=16, K=1, stride=1)

    print("KERNEL_OK")
</pallas_src>

<mosaic_0001>
module attributes {stable_mosaic.version = 11 : i64} {
  func.func @_masked_conv1d_kernel(%arg0: i32, %arg1: i32, %arg2: memref<1x1x4x16xbf16, #tpu.memory_space<vmem>>, %arg3: memref<1x1x1x4x2xbf16, #tpu.memory_space<vmem>>, %arg4: memref<3x6x4xbf16, #tpu.memory_space<vmem>>, %arg5: memref<6x1xf32, #tpu.memory_space<vmem>>, %arg6: memref<1x1x16xf32, #tpu.memory_space<vmem>>, %arg7: memref<1x6x16xf32, #tpu.memory_space<vmem>>, %arg8: memref<1x4x18xbf16, #tpu.memory_space<vmem>>) attributes {dimension_semantics = [#tpu.dimension_semantics<parallel>, #tpu.dimension_semantics<parallel>], iteration_bounds = array<i64: 2, 1>, scalar_prefetch = 0 : i64, scratch_operands = 1 : i64, tpu.core_type = #tpu.core_type<tc>, window_params = [{transform_indices = @transform_0, window_bounds = array<i64: 1, 1, 4, 16>}, {transform_indices = @transform_1, window_bounds = array<i64: 1, 1, 1, 4, 2>}, {pipeline_mode = #tpu.pipeline_mode<synchronous>, transform_indices = @transform_2, window_bounds = array<i64: 3, 6, 4>}, {pipeline_mode = #tpu.pipeline_mode<synchronous>, transform_indices = @transform_3, window_bounds = array<i64: 6, 1>}, {transform_indices = @transform_4, window_bounds = array<i64: 1, 1, 16>}, {transform_indices = @transform_5, window_bounds = array<i64: 1, 6, 16>}]} {
    %c0 = arith.constant 0 : index
    %c0_0 = arith.constant 0 : index
    %c0_1 = arith.constant 0 : index
    %c0_2 = arith.constant 0 : index
    %0 = vector.load %arg2[%c0, %c0_0, %c0_1, %c0_2] : memref<1x1x4x16xbf16, #tpu.memory_space<vmem>>, vector<1x1x4x16xbf16>
    %1 = vector.shape_cast %0 : vector<1x1x4x16xbf16> to vector<1x4x16xbf16>
    %c0_3 = arith.constant 0 : index
    %c0_4 = arith.constant 0 : index
    %c1 = arith.constant 1 : index
    %2 = vector.load %arg8[%c0_3, %c0_4, %c1] : memref<1x4x18xbf16, #tpu.memory_space<vmem>>, vector<1x4x16xbf16>
    tpu.vector_store %arg8[%c0_3, %c0_4, %c1], %1 {strides = array<i32>} : memref<1x4x18xbf16, #tpu.memory_space<vmem>>, vector<1x4x16xbf16>,
    %c0_5 = arith.constant 0 : index
    %c0_6 = arith.constant 0 : index
    %c0_7 = arith.constant 0 : index
    %c0_8 = arith.constant 0 : index
    %c0_9 = arith.constant 0 : index
    %3 = vector.load %arg3[%c0_5, %c0_6, %c0_7, %c0_8, %c0_9] : memref<1x1x1x4x2xbf16, #tpu.memory_space<vmem>>, vector<1x1x1x4x1xbf16>
    %4 = vector.shape_cast %3 : vector<1x1x1x4x1xbf16> to vector<1x4x1xbf16>
    %c0_10 = arith.constant 0 : index
    %c0_11 = arith.constant 0 : index
    %c0_12 = arith.constant 0 : index
    %5 = vector.load %arg8[%c0_10, %c0_11, %c0_12] : memref<1x4x18xbf16, #tpu.memory_space<vmem>>, vector<1x4x1xbf16>
    tpu.vector_store %arg8[%c0_10, %c0_11, %c0_12], %4 {strides = array<i32>} : memref<1x4x18xbf16, #tpu.memory_space<vmem>>, vector<1x4x1xbf16>,
    %c0_13 = arith.constant 0 : index
    %c0_14 = arith.constant 0 : index
    %c0_15 = arith.constant 0 : index
    %c0_16 = arith.constant 0 : index
    %c1_17 = arith.constant 1 : index
    %6 = vector.load %arg3[%c0_13, %c0_14, %c0_15, %c0_16, %c1_17] : memref<1x1x1x4x2xbf16, #tpu.memory_space<vmem>>, vector<1x1x1x4x1xbf16>
    %7 = vector.shape_cast %6 : vector<1x1x1x4x1xbf16> to vector<1x4x1xbf16>
    %c0_18 = arith.constant 0 : index
    %c0_19 = arith.constant 0 : index
    %c17 = arith.constant 17 : index
    %8 = vector.load %arg8[%c0_18, %c0_19, %c17] : memref<1x4x18xbf16, #tpu.memory_space<vmem>>, vector<1x4x1xbf16>
    tpu.vector_store %arg8[%c0_18, %c0_19, %c17], %7 {strides = array<i32>} : memref<1x4x18xbf16, #tpu.memory_space<vmem>>, vector<1x4x1xbf16>,
    %c0_20 = arith.constant 0 : index
    %c0_21 = arith.constant 0 : index
    %9 = vector.load %arg5[%c0_20, %c0_21] : memref<6x1xf32, #tpu.memory_space<vmem>>, vector<6x1xf32>
    %10 = vector.shape_cast %9 : vector<6x1xf32> to vector<6x1xf32>
    %11 = vector.broadcast %10 : vector<6x1xf32> to vector<6x16xf32>
    %c0_22 = arith.constant 0 : index
    %c0_23 = arith.constant 0 : index
    %c0_24 = arith.constant 0 : index
    %12 = vector.load %arg8[%c0_22, %c0_23, %c0_24] : memref<1x4x18xbf16, #tpu.memory_space<vmem>>, vector<1x4x16xbf16>
    %13 = vector.shape_cast %12 : vector<1x4x16xbf16> to vector<4x16xbf16>
    %c0_25 = arith.constant 0 : index
    %c0_26 = arith.constant 0 : index
    %c0_27 = arith.constant 0 : index
    %14 = vector.load %arg4[%c0_25, %c0_26, %c0_27] : memref<3x6x4xbf16, #tpu.memory_space<vmem>>, vector<1x6x4xbf16>
    %15 = vector.shape_cast %14 : vector<1x6x4xbf16> to vector<6x4xbf16>
    %cst = arith.constant dense<0.000000e+00> : vector<6x16xf32>
    %16 = tpu.matmul %15, %13, %cst {dimension_numbers = #tpu.dot_dimension_numbers<[1], [0], [0], [1], [0, 0, 1, 1], [], []>} : vector<6x4xbf16>, vector<4x16xbf16>, vector<6x16xf32> -> vector<6x16xf32>
    %17 = arith.addf %11, %16 : vector<6x16xf32>
    %c0_28 = arith.constant 0 : index
    %c0_29 = arith.constant 0 : index
    %c1_30 = arith.constant 1 : index
    %18 = vector.load %arg8[%c0_28, %c0_29, %c1_30] : memref<1x4x18xbf16, #tpu.memory_space<vmem>>, vector<1x4x16xbf16>
    %19 = vector.shape_cast %18 : vector<1x4x16xbf16> to vector<4x16xbf16>
    %c1_31 = arith.constant 1 : index
    %c0_32 = arith.constant 0 : index
    %c0_33 = arith.constant 0 : index
    %20 = vector.load %arg4[%c1_31, %c0_32, %c0_33] : memref<3x6x4xbf16, #tpu.memory_space<vmem>>, vector<1x6x4xbf16>
    %21 = vector.shape_cast %20 : vector<1x6x4xbf16> to vector<6x4xbf16>
    %cst_34 = arith.constant dense<0.000000e+00> : vector<6x16xf32>
    %22 = tpu.matmul %21, %19, %cst_34 {dimension_numbers = #tpu.dot_dimension_numbers<[1], [0], [0], [1], [0, 0, 1, 1], [], []>} : vector<6x4xbf16>, vector<4x16xbf16>, vector<6x16xf32> -> vector<6x16xf32>
    %23 = arith.addf %17, %22 : vector<6x16xf32>
    %c0_35 = arith.constant 0 : index
    %c0_36 = arith.constant 0 : index
    %c2 = arith.constant 2 : index
    %24 = vector.load %arg8[%c0_35, %c0_36, %c2] : memref<1x4x18xbf16, #tpu.memory_space<vmem>>, vector<1x4x16xbf16>
    %25 = vector.shape_cast %24 : vector<1x4x16xbf16> to vector<4x16xbf16>
    %c2_37 = arith.constant 2 : index
    %c0_38 = arith.constant 0 : index
    %c0_39 = arith.constant 0 : index
    %26 = vector.load %arg4[%c2_37, %c0_38, %c0_39] : memref<3x6x4xbf16, #tpu.memory_space<vmem>>, vector<1x6x4xbf16>
    %27 = vector.shape_cast %26 : vector<1x6x4xbf16> to vector<6x4xbf16>
    %cst_40 = arith.constant dense<0.000000e+00> : vector<6x16xf32>
    %28 = tpu.matmul %27, %25, %cst_40 {dimension_numbers = #tpu.dot_dimension_numbers<[1], [0], [0], [1], [0, 0, 1, 1], [], []>} : vector<6x4xbf16>, vector<4x16xbf16>, vector<6x16xf32> -> vector<6x16xf32>
    %29 = arith.addf %23, %28 : vector<6x16xf32>
    %c0_41 = arith.constant 0 : index
    %c0_42 = arith.constant 0 : index
    %c0_43 = arith.constant 0 : index
    %30 = vector.load %arg6[%c0_41, %c0_42, %c0_43] : memref<1x1x16xf32, #tpu.memory_space<vmem>>, vector<1x1x16xf32>
    %31 = vector.shape_cast %30 : vector<1x1x16xf32> to vector<1x16xf32>
    %32 = vector.broadcast %31 : vector<1x16xf32> to vector<6x16xf32>
    %33 = arith.mulf %29, %32 : vector<6x16xf32>
    %c0_44 = arith.constant 0 : index
    %c0_45 = arith.constant 0 : index
    %c0_46 = arith.constant 0 : index
    %34 = vector.load %arg7[%c0_44, %c0_45, %c0_46] : memref<1x6x16xf32, #tpu.memory_space<vmem>>, vector<1x6x16xf32>
    %35 = vector.shape_cast %34 : vector<1x6x16xf32> to vector<6x16xf32>
    %36 = vector.shape_cast %33 : vector<6x16xf32> to vector<1x6x16xf32>
    tpu.vector_store %arg7[%c0_44, %c0_45, %c0_46], %36 {strides = array<i32>} : memref<1x6x16xf32, #tpu.memory_space<vmem>>, vector<1x6x16xf32>,
    return
  }
  func.func @transform_0(%arg0: i32, %arg1: i32) -> (i32, i32, i32, i32) {
    %c0_i32 = arith.constant 0 : i32
    %c0_i32_0 = arith.constant 0 : i32
    %c0_i32_1 = arith.constant 0 : i32
    return %arg0, %c0_i32, %c0_i32_0, %arg1 : i32, i32, i32, i32
  }
  func.func @transform_1(%arg0: i32, %arg1: i32) -> (i32, i32, i32, i32, i32) {
    %c0_i32 = arith.constant 0 : i32
    %c0_i32_0 = arith.constant 0 : i32
    %c0_i32_1 = arith.constant 0 : i32
    %c0_i32_2 = arith.constant 0 : i32
    return %arg0, %arg1, %c0_i32, %c0_i32_0, %c0_i32_1 : i32, i32, i32, i32, i32
  }
  func.func @transform_2(%arg0: i32, %arg1: i32) -> (i32, i32, i32) {
    %c0_i32 = arith.constant 0 : i32
    %c0_i32_0 = arith.constant 0 : i32
    %c0_i32_1 = arith.constant 0 : i32
    %c0_i32_2 = arith.constant 0 : i32
    return %c0_i32, %c0_i32_0, %c0_i32_1 : i32, i32, i32
  }
  func.func @transform_3(%arg0: i32, %arg1: i32) -> (i32, i32) {
    %c0_i32 = arith.constant 0 : i32
    %c0_i32_0 = arith.constant 0 : i32
    %c0_i32_1 = arith.constant 0 : i32
    return %c0_i32, %c0_i32_0 : i32, i32
  }
  func.func @transform_4(%arg0: i32, %arg1: i32) -> (i32, i32, i32) {
    %c0_i32 = arith.constant 0 : i32
    %c0_i32_0 = arith.constant 0 : i32
    return %arg0, %c0_i32, %arg1 : i32, i32, i32
  }
  func.func @transform_5(%arg0: i32, %arg1: i32) -> (i32, i32, i32) {
    %c0_i32 = arith.constant 0 : i32
    %c0_i32_0 = arith.constant 0 : i32
    return %arg0, %c0_i32, %arg1 : i32, i32, i32
  }
}

</mosaic_0001>

<llo_original>
// kernel: tpu_custom_call.1
$region0: #{tpu_custom_call.1}
  #allocation0 [shape = 'u32[]', space=smem, size = 0x4, offset = 0x4, fixed_abs, tag = 'smem constant byte address 0x4 - core index']
  #allocation1 [shape = 'u32[72,128]{1,0:T(1,128)}', space=vmem, size = 0x9000, scoped, tag = 'internal scratch']
  #allocation2 [shape = 'bf16[1,4,18]{2,1,0:T(4,128)(2,1)}', space=vmem, size = 0x400, scoped, tag = 'scratch operand']
  %s0 = inlined_call_operand.vmem [shape: bf16[2,1,4,16], index: 0, kind: input, shape index: {}]
  %s1 = inlined_call_operand.vmem [shape: bf16[2,1,1,4,2], index: 1, kind: input, shape index: {}]
  %s2 = inlined_call_operand.vmem [shape: bf16[3,6,4], index: 2, kind: input, shape index: {}]
  %s3 = inlined_call_operand.vmem [shape: f32[6,1], index: 3, kind: input, shape index: {}]
  %s4 = inlined_call_operand.vmem [shape: f32[2,1,16], index: 4, kind: input, shape index: {}]
  %s5 = inlined_call_operand.vmem [shape: f32[2,6,16], index: 5, kind: output, shape index: {}]
  %s6 = sld [smem:[#allocation0]]
  $region53: #{tpu_custom_call.1} parent=0
    _
  %s8 = ssub.s32 1, %s6
  %s9 = scalar_select 0, %s8, %s6
  loop: start=0, step=1, limit=4
  $region2: #{tpu_custom_call.1} parent=0 // loop_pre_header
    _
  $region3: #{tpu_custom_call.1} parent=0 // loop_header
    %s11 = sphi 0, %s15
    %p12 = scmp.ge.s32.totalorder %s11, 4
    %s18 = sphi 0, %s30
    %s19 = sphi 0, %s26
    %s20 = sphi 0, %s18
    %s21 = sphi 0, %s19
    %s22 = sphi 0, %s20
    %s23 = sphi 0, %s21
    %s35 = sphi 0, %s37
    %s38 = sphi 0, %s35
    %s39 = sphi 0, %s38
    %s55 = sphi 0, %s39
    %s63 = sphi 0, %s65
    %s66 = sphi 0, %s63
    %s67 = sphi 0, %s66
    %s83 = sphi 0, %s67
    %s87 = sphi 0, %s87
    %s89 = sphi 0, %s87
    %s90 = sphi 0, %s89
    %s104 = sphi 0, %s90
    %s108 = sphi 0, %s108
    %s110 = sphi 0, %s108
    %s111 = sphi 0, %s110
    %s125 = sphi 0, %s111
    %s133 = sphi 0, %s135
    %s136 = sphi 0, %s133
    %s137 = sphi 0, %s136
    %s153 = sphi 0, %s137
    %s161 = sphi 0, %s163
    %s164 = sphi 0, %s161
    %s165 = sphi 0, %s164
    %s181 = sphi 0, %s165
  $region4: #{tpu_custom_call.1} parent=0 // loop_header_branch
    %14 = sbr.rel (%p12) target = $region8
  $region5: #{tpu_custom_call.1} parent=0 // loop_body
    %s16 = ssub.s32 %s11, 1
    %s17 = ssub.s32 %s11, 2
    %s24 = sadd.s32 1, %s19
    %p25 = scmp.ge.s32.totalorder %s24, 1
    %s26 = scalar_select %p25, 0, %s24
    %s27 = sadd.s32 1, %s18
    %s28 = scalar_select %p25, %s27, %s18
    %p29 = scmp.ge.s32.totalorder %s28, 2
    %s30 = scalar_select %p29, 0, %s28
    %s31 = ssub.s32 %s18, %s30
    %s32 = ssub.s32 %s19, %s26
    %s33 = sor.u32 %s31, %s32
    %p34 = scmp.eq.s32.totalorder %s33, 0
    %s36 = sadd.s32 %s35, 1
    %s37 = scalar_select %p34, %s35, %s36
    %p40 = pneg %p34
    %p41 = scmp.eq.s32.totalorder %s11, 1
    %p42 = por %p40, %p41
    %p43 = scmp.ne.s32.totalorder %s35, %s38
    %p44 = scmp.eq.s32.totalorder %s11, 0
    %p45 = por %p43, %p44
    %p46 = scmp.ne.s32.totalorder %s35, %s38
    %p47 = scmp.eq.s32.totalorder %s16, 1
    %p48 = por %p46, %p47
    %p49 = scmp.ne.s32.totalorder %s38, %s39
    %p50 = scmp.eq.s32.totalorder %s16, 0
    %p51 = por %p49, %p50
    %p52 = scmp.ne.s32.totalorder %s38, %s39
    %p53 = scmp.eq.s32.totalorder %s17, 1
    %p54 = por %p52, %p53
    %p56 = scmp.ne.s32.totalorder %s39, %s55
    %p57 = scmp.eq.s32.totalorder %s17, 0
    %p58 = por %p56, %p57
    %s59 = ssub.s32 %s18, %s30
    %s60 = ssub.s32 %s19, %s26
    %s61 = sor.u32 %s59, %s60
    %p62 = scmp.eq.s32.totalorder %s61, 0
    %s64 = sadd.s32 %s63, 1
    %s65 = scalar_select %p62, %s63, %s64
    %p68 = pneg %p62
    %p69 = scmp.eq.s32.totalorder %s11, 1
    %p70 = por %p68, %p69
    %p71 = scmp.ne.s32.totalorder %s63, %s66
    %p72 = scmp.eq.s32.totalorder %s11, 0
    %p73 = por %p71, %p72
    %p74 = scmp.ne.s32.totalorder %s63, %s66
    %p75 = scmp.eq.s32.totalorder %s16, 1
    %p76 = por %p74, %p75
    %p77 = scmp.ne.s32.totalorder %s66, %s67
    %p78 = scmp.eq.s32.totalorder %s16, 0
    %p79 = por %p77, %p78
    %p80 = scmp.ne.s32.totalorder %s66, %s67
    %p81 = scmp.eq.s32.totalorder %s17, 1
    %p82 = por %p80, %p81
    %p84 = scmp.ne.s32.totalorder %s67, %s83
    %p85 = scmp.eq.s32.totalorder %s17, 0
    %p86 = por %p84, %p85
    %s88 = sadd.s32 %s87, 1
    %p91 = scmp.eq.s32.totalorder %s11, 1
    %p92 = scmp.ne.s32.totalorder %s87, %s89
    %p93 = scmp.eq.s32.totalorder %s11, 0
    %p94 = por %p92, %p93
    %p95 = scmp.ne.s32.totalorder %s87, %s89
    %p96 = scmp.eq.s32.totalorder %s16, 1
    %p97 = por %p95, %p96
    %p98 = scmp.ne.s32.totalorder %s89, %s90
    %p99 = scmp.eq.s32.totalorder %s16, 0
    %p100 = por %p98, %p99
    %p101 = scmp.ne.s32.totalorder %s89, %s90
    %p102 = scmp.eq.s32.totalorder %s17, 1
    %p103 = por %p101, %p102
    %p105 = scmp.ne.s32.totalorder %s90, %s104
    %p106 = scmp.eq.s32.totalorder %s17, 0
    %p107 = por %p105, %p106
    %s109 = sadd.s32 %s108, 1
    %p112 = scmp.eq.s32.totalorder %s11, 1
    %p113 = scmp.ne.s32.totalorder %s108, %s110
    %p114 = scmp.eq.s32.totalorder %s11, 0
    %p115 = por %p113, %p114
    %p116 = scmp.ne.s32.totalorder %s108, %s110
    %p117 = scmp.eq.s32.totalorder %s16, 1
    %p118 = por %p116, %p117
    %p119 = scmp.ne.s32.totalorder %s110, %s111
    %p120 = scmp.eq.s32.totalorder %s16, 0
    %p121 = por %p119, %p120
    %p122 = scmp.ne.s32.totalorder %s110, %s111
    %p123 = scmp.eq.s32.totalorder %s17, 1
    %p124 = por %p122, %p123
    %p126 = scmp.ne.s32.totalorder %s111, %s125
    %p127 = scmp.eq.s32.totalorder %s17, 0
    %p128 = por %p126, %p127
    %s129 = ssub.s32 %s18, %s30
    %s130 = ssub.s32 %s19, %s26
    %s131 = sor.u32 %s129, %s130
    %p132 = scmp.eq.s32.totalorder %s131, 0
    %s134 = sadd.s32 %s133, 1
    %s135 = scalar_select %p132, %s133, %s134
    %p138 = pneg %p132
    %p139 = scmp.eq.s32.totalorder %s11, 1
    %p140 = por %p138, %p139
    %p141 = scmp.ne.s32.totalorder %s133, %s136
    %p142 = scmp.eq.s32.totalorder %s11, 0
    %p143 = por %p141, %p142
    %p144 = scmp.ne.s32.totalorder %s133, %s136
    %p145 = scmp.eq.s32.totalorder %s16, 1
    %p146 = por %p144, %p145
    %p147 = scmp.ne.s32.totalorder %s136, %s137
    %p148 = scmp.eq.s32.totalorder %s16, 0
    %p149 = por %p147, %p148
    %p150 = scmp.ne.s32.totalorder %s136, %s137
    %p151 = scmp.eq.s32.totalorder %s17, 1
    %p152 = por %p150, %p151
    %p154 = scmp.ne.s32.totalorder %s137, %s153
    %p155 = scmp.eq.s32.totalorder %s17, 0
    %p156 = por %p154, %p155
    %s157 = ssub.s32 %s18, %s30
    %s158 = ssub.s32 %s19, %s26
    %s159 = sor.u32 %s157, %s158
    %p160 = scmp.eq.s32.totalorder %s159, 0
    %s162 = sadd.s32 %s161, 1
    %s163 = scalar_select %p160, %s161, %s162
    %p166 = pneg %p160
    %p167 = scmp.eq.s32.totalorder %s11, 1
    %p168 = por %p166, %p167
    %p169 = scmp.ne.s32.totalorder %s161, %s164
    %p170 = scmp.eq.s32.totalorder %s11, 0
    %p171 = por %p169, %p170
    %p172 = scmp.ne.s32.totalorder %s161, %s164
    %p173 = scmp.eq.s32.totalorder %s16, 1
    %p174 = por %p172, %p173
    %p175 = scmp.ne.s32.totalorder %s164, %s165
    %p176 = scmp.eq.s32.totalorder %s16, 0
    %p177 = por %p175, %p176
    %p178 = scmp.ne.s32.totalorder %s164, %s165
    %p179 = scmp.eq.s32.totalorder %s17, 1
    %p180 = por %p178, %p179
    %p182 = scmp.ne.s32.totalorder %s165, %s181
    %p183 = scmp.eq.s32.totalorder %s17, 0
    %p184 = por %p182, %p183
    %p185 = scmp.le.s32.totalorder 1, %s11
    %p186 = scmp.lt.s32.totalorder %s11, 3
    %p187 = pnand %p185, %p186
    %p188 = pneg %p187
    // Predicated region
    $region9: #{tpu_custom_call.1} parent=5 // pred_check
      _
    $region10: #{tpu_custom_call.1} parent=5 // pred_check_branch
      %190 = sbr.rel (%p187) target = $region12
    $region11: #{tpu_custom_call.1} parent=5 // pred_region
      %s191 = ssub.s32 %s11, 1
      // Predicated region
      $region13: #{tpu_custom_call.1} parent=11 // pred_check
        %p192 = pneg %p100
      $region14: #{tpu_custom_call.1} parent=11 // pred_check_branch
        %194 = sbr.rel (%p192) target = $region16
      $region15: #{tpu_custom_call.1} parent=11 // pred_region
        _
      $region16: #{tpu_custom_call.1} parent=11 // pred_fallthru
        _
      // Predicated region
      $region17: #{tpu_custom_call.1} parent=11 // pred_check
        %p195 = pneg %p121
      $region18: #{tpu_custom_call.1} parent=11 // pred_check_branch
        %197 = sbr.rel (%p195) target = $region20
      $region19: #{tpu_custom_call.1} parent=11 // pred_region
        _
      $region20: #{tpu_custom_call.1} parent=11 // pred_fallthru
        _
    $region12: #{tpu_custom_call.1} parent=5 // pred_fallthru
      _
    %p198 = scmp.lt.s32.totalorder %s11, 2
    // Predicated region
    $region21: #{tpu_custom_call.1} parent=5 // pred_check
      %p199 = pneg %p198
    $region22: #{tpu_custom_call.1} parent=5 // pred_check_branch
      %201 = sbr.rel (%p199) target = $region24
    $region23: #{tpu_custom_call.1} parent=5 // pred_region
      // Predicated region
      $region25: #{tpu_custom_call.1} parent=23 // pred_check
        %p202 = pneg %p45
      $region26: #{tpu_custom_call.1} parent=23 // pred_check_branch
        %204 = sbr.rel (%p202) target = $region28
      $region27: #{tpu_custom_call.1} parent=23 // pred_region
        %p205 = scmp.lt.s32.totalorder %s18, 1
        %s206 = scalar_select %p205, %s18, 1
        %p207 = scmp.lt.s32.totalorder %s19, 0
        %s208 = scalar_select %p207, %s19, 0
        %s209 = sadd.s32 %s208, %s206
        %s210 = smul.addr %s209, 2
        %s211 = scalar_lea.vmem %s0, %s210
      $region28: #{tpu_custom_call.1} parent=23 // pred_fallthru
        _
      // Predicated region
      $region29: #{tpu_custom_call.1} parent=23 // pred_check
        %p212 = pneg %p73
      $region30: #{tpu_custom_call.1} parent=23 // pred_check_branch
        %214 = sbr.rel (%p212) target = $region32
      $region31: #{tpu_custom_call.1} parent=23 // pred_region
        %p215 = scmp.lt.s32.totalorder %s18, 1
        %s216 = scalar_select %p215, %s18, 1
        %p217 = scmp.lt.s32.totalorder %s19, 0
        %s218 = scalar_select %p217, %s19, 0
        %s219 = sadd.s32 %s218, %s216
        %s220 = smul.addr %s219, 2
        %s221 = scalar_lea.vmem %s1, %s220
      $region32: #{tpu_custom_call.1} parent=23 // pred_fallthru
        _
      // Predicated region
      $region33: #{tpu_custom_call.1} parent=23 // pred_check
        %p222 = pneg %p143
      $region34: #{tpu_custom_call.1} parent=23 // pred_check_branch
        %224 = sbr.rel (%p222) target = $region36
      $region35: #{tpu_custom_call.1} parent=23 // pred_region
        %p225 = scmp.lt.s32.totalorder %s18, 1
        %s226 = scalar_select %p225, %s18, 1
        %p227 = scmp.lt.s32.totalorder %s19, 0
        %s228 = scalar_select %p227, %s19, 0
        %s229 = sadd.s32 %s228, %s226
        %s230 = scalar_lea.vmem %s4, %s229
      $region36: #{tpu_custom_call.1} parent=23 // pred_fallthru
        _
    $region24: #{tpu_custom_call.1} parent=5 // pred_fallthru
      _
    %p231 = scmp.le.s32.totalorder 1, %s11
    %p232 = scmp.lt.s32.totalorder %s11, 3
    %p233 = pnand %p231, %p232
    %p234 = pneg %p233
    // Predicated region
    $region37: #{tpu_custom_call.1} parent=5 // pred_check
      _
    $region38: #{tpu_custom_call.1} parent=5 // pred_check_branch
      %236 = sbr.rel (%p233) target = $region40
    $region39: #{tpu_custom_call.1} parent=5 // pred_region
      %s237 = ssub.s32 %s11, 1
      %p238 = scmp.lt.s32.totalorder %s20, 1
      %s239 = scalar_select %p238, %s20, 1
      %p240 = scmp.lt.s32.totalorder %s21, 0
      %s241 = scalar_select %p240, %s21, 0
      %s242 = sadd.s32 %s241, %s239
      %s243 = smul.addr %s242, 2
      %s244 = scalar_lea.vmem %s0, %s243
      %p245 = pneg %p51
      %p246 = pneg %p48
      %p247 = scmp.lt.s32.totalorder %s20, 1
      %s248 = scalar_select %p247, %s20, 1
      %p249 = scmp.lt.s32.totalorder %s21, 0
      %s250 = scalar_select %p249, %s21, 0
      %s251 = sadd.s32 %s250, %s248
      %s252 = smul.addr %s251, 2
      %s253 = scalar_lea.vmem %s1, %s252
      %p254 = pneg %p79
      %p255 = pneg %p76
      %p256 = pneg %p100
      %p257 = pneg %p97
      %p258 = pneg %p121
      %p259 = pneg %p118
      %p260 = scmp.lt.s32.totalorder %s20, 1
      %s261 = scalar_select %p260, %s20, 1
      %p262 = scmp.lt.s32.totalorder %s21, 0
      %s263 = scalar_select %p262, %s21, 0
      %s264 = sadd.s32 %s263, %s261
      %s265 = scalar_lea.vmem %s4, %s264
      %p266 = pneg %p149
      %p267 = pneg %p146
      %p268 = pneg %p177
      %p269 = pneg %p174
      %p270 = scmp.lt.s32.totalorder %s20, 1
      %s271 = scalar_select %p270, %s20, 1
      %p272 = scmp.lt.s32.totalorder %s21, 0
      %s273 = scalar_select %p272, %s21, 0
      %s274 = sadd.s32 %s273, %s271
      %s275 = smul.addr %s274, 8
      %s276 = scalar_lea.vmem %s5, %s275
      %p277 = scmp.lt.s32.totalorder %s20, 1
      %s278 = scalar_select %p277, %s20, 1
      %p279 = scmp.lt.s32.totalorder %s21, 0
      %s280 = scalar_select %p279, %s21, 0
      %s281 = sadd.s32 %s280, %s278
      %s282 = smul.addr %s281, 2
      %s283 = scalar_lea.vmem %s0, %s282
      %p284 = scmp.lt.s32.totalorder %s20, 1
      %s285 = scalar_select %p284, %s20, 1
      %p286 = scmp.lt.s32.totalorder %s21, 0
      %s287 = scalar_select %p286, %s21, 0
      %s288 = sadd.s32 %s287, %s285
      %s289 = smul.addr %s288, 2
      %s290 = scalar_lea.vmem %s1, %s289
      %p291 = scmp.lt.s32.totalorder %s20, 1
      %s292 = scalar_select %p291, %s20, 1
      %p293 = scmp.lt.s32.totalorder %s21, 0
      %s294 = scalar_select %p293, %s21, 0
      %s295 = sadd.s32 %s294, %s292
      %s296 = scalar_lea.vmem %s4, %s295
      %p297 = scmp.lt.s32.totalorder %s20, 1
      %s298 = scalar_select %p297, %s20, 1
      %p299 = scmp.lt.s32.totalorder %s21, 0
      %s300 = scalar_select %p299, %s21, 0
      %s301 = sadd.s32 %s300, %s298
      %s302 = smul.addr %s301, 8
      %s303 = scalar_lea.vmem %s5, %s302
      %v305 = vld [vmem:[%s283] sm:$0x3]
      %307 = vrot.lane.b32.xlu0 %v305, 1
      %v308 = vpop.permute.xlu0 %307
      %vm310 = vcmask 132104
      %311 = vst.msk [vmem:[#allocation2] sm:$0x3] %vm310, %v308
      %v312 = vld [vmem:[%s290] sm:$0x3]
      %vm313 = vcmask 1024
      %314 = vst.msk [vmem:[#allocation2] sm:$0x3] %vm313, %v312
      %v315 = vld [vmem:[%s290] sm:$0x3]
      %317 = vrot.lane.b32.xlu0 %v315, 16
      %v318 = vpop.permute.xlu0 %317
      %vm320 = vcmask 140424
      %321 = vst.msk [vmem:[#allocation2] sm:$0x3] %vm320, %v318
      %v322 = vld [vmem:[%s3] sm:$0x3f]
      %324 = vset.pattern.permute.xlu0 0
      %325 = vperm.xlu0 %324, %v322
      %v326 = vpop.permute.xlu0 %325
      %v328 = vld [vmem:[#allocation2] sm:$0x3]
      %v329 = vld [vmem:[%s2] sm:$0x7]
      %vm330 = vcmask 31744
      %v332 = vsel %vm330, %v329, 0
      %vm334 = vcmask 1041408
      %v336 = vsel %vm334, %v328, 0
      %338 = vmatpush.bf16.msra.mxu0 0
      %339 = vmatpush.bf16.msra.mxu0 0
      %340 = vmatpush.bf16.msra.mxu0 0
      %341 = vmatpush.bf16.msra.mxu0 0
      %342 = vmatpush.bf16.msra.mxu0 0
      %343 = vmatpush.bf16.msra.mxu0 0
      %344 = vmatpush.bf16.msra.mxu0 0
      %345 = vmatpush.bf16.msra.mxu0 %v336
      %346 = vmatmul.bf16.gmra.mxu0 %v332
      %v347 = vpop.f32.mrf.mxu0
      %v348 = vadd.f32 0.0, %v347
      %v349 = vpop.f32.mrf.mxu0
      %350 = vdwg.mxu0
      %v351 = vadd.f32 %v326, %v348
      %s352 = scalar_lea.vmem %s2, 4
      %v353 = vld [vmem:[%s352] sm:$0x7]
      %354 = vst [vmem:[#allocation1] ss:$4 sm:$0xff] %v328
      %v355 = vld.sshfl [vmem:[#allocation1] sm:$0xff pattern:$0x73625140]
      %357 = vrot.lane.b32.xlu0 %v355, 127
      %v358 = vpop.permute.xlu0 %357
      %v360 = vsel %vm330, %v353, 0
      %v363 = vsel %vm334, %v358, 0
      %365 = vmatpush.bf16.msra.mxu0 0
      %366 = vmatpush.bf16.msra.mxu0 0
      %367 = vmatpush.bf16.msra.mxu0 0
      %368 = vmatpush.bf16.msra.mxu0 0
      %369 = vmatpush.bf16.msra.mxu0 0
      %370 = vmatpush.bf16.msra.mxu0 0
      %371 = vmatpush.bf16.msra.mxu0 0
      %372 = vmatpush.bf16.msra.mxu0 %v363
      %373 = vmatmul.bf16.gmra.mxu0 %v360
      %v374 = vpop.f32.mrf.mxu0
      %v375 = vadd.f32 0.0, %v374
      %v376 = vpop.f32.mrf.mxu0
      %377 = vdwg.mxu0
      %v378 = vadd.f32 %v351, %v375
      %v379 = vld [vmem:[#allocation2] sm:$0x3]
      %s380 = scalar_lea.vmem %s2, 8
      %v381 = vld [vmem:[%s380] sm:$0x7]
      %383 = vst [vmem:[#allocation1] ss:$4 sm:$0xff] %v379
      %v384 = vld.sshfl [vmem:[#allocation1] sm:$0xff pattern:$0x73625140]
      %386 = vrot.lane.b32.xlu0 %v384, 126
      %v387 = vpop.permute.xlu0 %386
      %v389 = vsel %vm330, %v381, 0
      %v392 = vsel %vm334, %v387, 0
      %394 = vmatpush.bf16.msra.mxu0 0
      %395 = vmatpush.bf16.msra.mxu0 0
      %396 = vmatpush.bf16.msra.mxu0 0
      %397 = vmatpush.bf16.msra.mxu0 0
      %398 = vmatpush.bf16.msra.mxu0 0
      %399 = vmatpush.bf16.msra.mxu0 0
      %400 = vmatpush.bf16.msra.mxu0 0
      %401 = vmatpush.bf16.msra.mxu0 %v392
      %402 = vmatmul.bf16.gmra.mxu0 %v389
      %v403 = vpop.f32.mrf.mxu0
      %v404 = vadd.f32 0.0, %v403
      %v405 = vpop.f32.mrf.mxu0
      %406 = vdwg.mxu0
      %v407 = vadd.f32 %v378, %v404
      %v408 = vld [vmem:[%s296] sm:$0x1]
      %v410 = vperm.slane %v408, 0
      %v412 = vmul.f32 %v407, %v410
      %vm413 = vcmask 128000
      %414 = vst.msk [vmem:[%s303] sm:$0x3f] %vm413, %v412
      %p415 = scmp.lt.s32.totalorder %s20, 1
      %s416 = scalar_select %p415, %s20, 1
      %p417 = scmp.lt.s32.totalorder %s21, 0
      %s418 = scalar_select %p417, %s21, 0
      %s419 = sadd.s32 %s418, %s416
      %s420 = smul.addr %s419, 8
      %s421 = scalar_lea.vmem %s5, %s420
      // Predicated region
      $region41: #{tpu_custom_call.1} parent=39 // pred_check
        %p422 = pneg %p174
      $region42: #{tpu_custom_call.1} parent=39 // pred_check_branch
        %424 = sbr.rel (%p422) target = $region44
      $region43: #{tpu_custom_call.1} parent=39 // pred_region
        _
      $region44: #{tpu_custom_call.1} parent=39 // pred_fallthru
        _
    $region40: #{tpu_custom_call.1} parent=5 // pred_fallthru
      _
    %p425 = scmp.le.s32.totalorder 2, %s11
    // Predicated region
    $region45: #{tpu_custom_call.1} parent=5 // pred_check
      %p426 = pneg %p425
    $region46: #{tpu_custom_call.1} parent=5 // pred_check_branch
      %428 = sbr.rel (%p426) target = $region48
    $region47: #{tpu_custom_call.1} parent=5 // pred_region
      %s429 = ssub.s32 %s11, 2
      // Predicated region
      $region49: #{tpu_custom_call.1} parent=47 // pred_check
        %p430 = pneg %p180
      $region50: #{tpu_custom_call.1} parent=47 // pred_check_branch
        %432 = sbr.rel (%p430) target = $region52
      $region51: #{tpu_custom_call.1} parent=47 // pred_region
        %p433 = scmp.lt.s32.totalorder %s22, 1
        %s434 = scalar_select %p433, %s22, 1
        %p435 = scmp.lt.s32.totalorder %s23, 0
        %s436 = scalar_select %p435, %s23, 0
        %s437 = sadd.s32 %s436, %s434
        %s438 = smul.addr %s437, 8
        %s439 = scalar_lea.vmem %s5, %s438
      $region52: #{tpu_custom_call.1} parent=47 // pred_fallthru
        _
    $region48: #{tpu_custom_call.1} parent=5 // pred_fallthru
      _
  $region6: #{tpu_custom_call.1} parent=0 // loop_footer
    %s15 = sadd.s32 1, %s11
  $region7: #{tpu_custom_call.1} parent=0 // loop_footer_branch
    %10 = sbr.rel target = $region3
  $region8: #{tpu_custom_call.1} parent=0 // loop_exit
    _

</llo_original>
